<compile_context>
chip_gen: v7x
topology: tpu7x:2x2x1
jax: 0.10.0
libtpu: 0.0.40
codegen_flags: <defaults>
</compile_context>

<pallas_src>
import jax
import jax.numpy as jnp
from jax.experimental import pallas as pl
from jax.experimental.pallas import tpu as pltpu

ALPHA = 0.5
LEAK = 0.01

# Per-block byte target: ~1 MiB keeps double-buffered in+out (~4 MiB) well
# inside every generation's default scoped VMEM (v5e 16 MiB, v6e 32 MiB,
# v7x 32 of 64 MiB) and, per v6e measurements, already reaches ~85% of HBM
# roofline; bigger blocks only burn VMEM / reduce grid steps for megacore.
_TARGET_BLOCK_BYTES = 1 << 20


def _leaky_ada_kernel(x_ref, o_ref):
    x = x_ref[...]
    zero = jnp.zeros((), dtype=x.dtype)
    neg = jnp.minimum(x, zero)   # min(x, 0)
    pos = jnp.maximum(x, zero)   # max(x, 0)
    # exp goes to the EUP (separate issue slot); rest is VPU elementwise.
    # NaN-free form: for x <= 0 we have pos == 0, so the term is exactly 0
    # (the eager 0*exp(-alpha*x) form yields 0*inf=NaN for very negative x);
    # for x > 0 it is bit-identical to exp(-alpha*x).
    o_ref[...] = LEAK * neg + pos * jnp.exp(-ALPHA * pos)


def _pick_lane(n: int):
    """Widest lane-dense (multiple of 128) column count that divides n."""
    for cand in (8192, 4096, 2048, 1024, 512, 256, 128):
        if n % cand == 0:
            return cand
    return None


def _pick_tile_rows(rows: int, lane: int, itemsize: int, target_bytes: int) -> int:
    """Row-tile: ~target_bytes per block, multiple of 8 (or full rows)."""
    max_rows = max(1, target_bytes // (lane * itemsize))
    if rows <= max_rows:
        return rows  # single block spanning all rows (block dim == full dim is legal)
    # Prefer a multiple-of-8 tile that divides rows exactly (no ragged last block).
    t = (max_rows // 8) * 8
    while t >= 8:
        if rows % t == 0:
            return t
        t -= 8
    # No exact divisor: largest multiple-of-8 tile; Pallas masks the ragged block.
    return max(8, (max_rows // 8) * 8)


def leaky_ada(x: jnp.ndarray, *, target_block_bytes: int = _TARGET_BLOCK_BYTES) -> jnp.ndarray:
    """Elementwise LeakyADA on arrays of any shape (NCHW conv activations, etc.)."""
    orig_shape = x.shape
    dtype = x.dtype
    n = x.size
    itemsize = jnp.dtype(dtype).itemsize

    lane = _pick_lane(n)
    if lane is None:
        # Rare non-128-divisible case: pad the flat view (zeros are a fixed point
        # of the activation, so padding is numerically safe), slice afterwards.
        lane = 1024
        n_pad = pl.cdiv(n, lane) * lane
        x_flat = jnp.pad(jnp.ravel(x), (0, n_pad - n))
        padded = True
    else:
        # Fast path: pure reshape, no extra HBM passes.
        n_pad = n
        x_flat = jnp.ravel(x)
        padded = False

    rows = n_pad // lane
    x2d = x_flat.reshape(rows, lane)

    tile_rows = _pick_tile_rows(rows, lane, itemsize, target_block_bytes)
    grid = (pl.cdiv(rows, tile_rows),)

    cost = pl.CostEstimate(
        flops=6 * n_pad,
        transcendentals=n_pad,
        bytes_accessed=2 * n_pad * itemsize,
    )

    y2d = pl.pallas_call(
        _leaky_ada_kernel,
        out_shape=jax.ShapeDtypeStruct((rows, lane), dtype),
        grid_spec=pltpu.PrefetchScalarGridSpec(
            num_scalar_prefetch=0,
            grid=grid,
            in_specs=[pl.BlockSpec((tile_rows, lane), lambda i: (i, 0))],
            out_specs=pl.BlockSpec((tile_rows, lane), lambda i: (i, 0)),
        ),
        compiler_params=pltpu.CompilerParams(
            dimension_semantics=("parallel",),  # megacore-shardable on v7x
        ),
        cost_estimate=cost,
    )(x2d)

    if padded:
        return y2d.reshape(-1)[:n].reshape(orig_shape)
    return y2d.reshape(orig_shape)


def leaky_ada_ref(x):
    zero = jnp.zeros((), dtype=x.dtype)
    return LEAK * jnp.minimum(x, zero) + jnp.maximum(x, zero) * jnp.exp(-x * ALPHA)


if __name__ == "__main__":
    key = jax.random.PRNGKey(0)
    # Small NCHW input consistent with a conv-net activation use.
    x = jax.random.normal(key, (2, 4, 16, 16), dtype=jnp.float32)

    y = leaky_ada(x)
    y = jax.block_until_ready(y)

    y_ref = leaky_ada_ref(x)
    assert y.shape == x.shape and y.dtype == x.dtype
    assert jnp.allclose(y, y_ref, atol=1e-6, rtol=1e-6), "mismatch vs reference"

    print("KERNEL_OK")
</pallas_src>

<mosaic_0001>
module attributes {stable_mosaic.version = 11 : i64} {
  func.func @_leaky_ada_kernel(%arg0: i32, %arg1: memref<1x2048xf32, #tpu.memory_space<vmem>>, %arg2: memref<1x2048xf32, #tpu.memory_space<vmem>>) attributes {dimension_semantics = [#tpu.dimension_semantics<parallel>], iteration_bounds = array<i64: 1>, scalar_prefetch = 0 : i64, scratch_operands = 0 : i64, tpu.core_type = #tpu.core_type<tc>, window_params = [{transform_indices = @transform_0, window_bounds = array<i64: 1, 2048>}, {transform_indices = @transform_1, window_bounds = array<i64: 1, 2048>}]} {
    %c0 = arith.constant 0 : index
    %c0_0 = arith.constant 0 : index
    %0 = vector.load %arg1[%c0, %c0_0] : memref<1x2048xf32, #tpu.memory_space<vmem>>, vector<1x2048xf32>
    %cst = arith.constant 0.000000e+00 : f32
    %1 = vector.broadcast %cst : f32 to vector<1x2048xf32>
    %2 = arith.minimumf %0, %1 : vector<1x2048xf32>
    %cst_1 = arith.constant 0.000000e+00 : f32
    %3 = vector.broadcast %cst_1 : f32 to vector<1x2048xf32>
    %4 = arith.maximumf %0, %3 : vector<1x2048xf32>
    %cst_2 = arith.constant 0.00999999977 : f32
    %5 = vector.broadcast %cst_2 : f32 to vector<1x2048xf32>
    %6 = arith.mulf %5, %2 : vector<1x2048xf32>
    %cst_3 = arith.constant -5.000000e-01 : f32
    %7 = vector.broadcast %cst_3 : f32 to vector<1x2048xf32>
    %8 = arith.mulf %7, %4 : vector<1x2048xf32>
    %9 = math.exp %8 : vector<1x2048xf32>
    %10 = arith.mulf %4, %9 : vector<1x2048xf32>
    %11 = arith.addf %6, %10 : vector<1x2048xf32>
    %c0_4 = arith.constant 0 : index
    %c0_5 = arith.constant 0 : index
    %12 = vector.load %arg2[%c0_4, %c0_5] : memref<1x2048xf32, #tpu.memory_space<vmem>>, vector<1x2048xf32>
    tpu.vector_store %arg2[%c0_4, %c0_5], %11 {strides = array<i32>} : memref<1x2048xf32, #tpu.memory_space<vmem>>, vector<1x2048xf32>,
    return
  }
  func.func @transform_0(%arg0: i32) -> (i32, i32) {
    %c0_i32 = arith.constant 0 : i32
    %c0_i32_0 = arith.constant 0 : i32
    return %arg0, %c0_i32 : i32, i32
  }
  func.func @transform_1(%arg0: i32) -> (i32, i32) {
    %c0_i32 = arith.constant 0 : i32
    %c0_i32_0 = arith.constant 0 : i32
    return %arg0, %c0_i32 : i32, i32
  }
}

</mosaic_0001>

<llo_original>
// kernel: tpu_custom_call.1
$region0: #{tpu_custom_call.1}
  #allocation0 [shape = 'u32[]', space=smem, size = 0x4, offset = 0x4, fixed_abs, tag = 'smem constant byte address 0x4 - core index']
  #allocation1 [shape = 'u32[144,128]{1,0:T(1,128)}', space=vmem, size = 0x12000, scoped, tag = 'internal scratch']
  %s0 = inlined_call_operand.hbm [shape: f32[1,2048], index: 0, kind: input, shape index: {}]
  %s1 = inlined_call_operand.hbm [shape: f32[1,2048], index: 1, kind: output, shape index: {}]
  %s2 = sld [smem:[#allocation0]]
  $region18: #{tpu_custom_call.1} parent=0
    _
  %s4 = ssub.s32 1, %s2
  %s5 = scalar_select 0, %s4, %s2
  $region1: #{tpu_custom_call.1} parent=0
    #allocation2 [shape = 'u8[8192]{0}', space=vmem, size = 0x2000, scoped, tag = 'input window, operand 0, single buffered']
    #allocation3 [shape = 's32[1]{0}', space=sflag, size = 0x4, scoped, tag = 'scoped memory for tpu_custom_call.1']
    #allocation4 [shape = 's32[1]{0}', space=sflag, size = 0x4, scoped, tag = 'scoped memory for tpu_custom_call.1']
    #allocation5 [shape = 'u8[8192]{0}', space=vmem, size = 0x2000, scoped, tag = 'output window, operand 0, single buffered']
    %6 = vsyncpa [#allocation3], 0
    %7 = vsyncpa [#allocation4], 0
    // Predicated region
    $region2: #{tpu_custom_call.1} parent=1 // pred_check
      _
    $region3: #{tpu_custom_call.1} parent=1 // pred_check_branch
      %9 = sbr.rel (0) target = $region5
    $region4: #{tpu_custom_call.1} parent=1 // pred_region
      %s11 = ssub.s32 256, 256
      %12 = vsyncadd [#allocation3], %s11
      %s14 = sshll.u32 [#allocation2], 4
      %s15 = int_to_ptr.vmem [resolvable:$true] %s14
      %17 = dma.hbm_to_vmem [thread:$0]  %s0, 256, %s15, [#allocation3]
    $region5: #{tpu_custom_call.1} parent=1 // pred_fallthru
      _
    // Predicated region
    $region6: #{tpu_custom_call.1} parent=1 // pred_check
      _
    $region7: #{tpu_custom_call.1} parent=1 // pred_check_branch
      %19 = sbr.rel (0) target = $region9
    $region8: #{tpu_custom_call.1} parent=1 // pred_region
      %20 = dma.done [#allocation3], 256
    $region9: #{tpu_custom_call.1} parent=1 // pred_fallthru
      _
    %v21 = vld [vmem:[#allocation2] sm:$0xff]
    %v22 = vld [vmem:[#allocation2 + $0x8] sm:$0xff]
    %v23 = vmin.f32 %v21, 0.0
    %v24 = vmin.f32 %v22, 0.0
    %v25 = vmax.f32 %v21, 0.0
    %v26 = vmax.f32 %v22, 0.0
    %v27 = vmul.f32 %v23, 0.01
    %v28 = vmul.f32 %v24, 0.01
    %v29 = vmul.f32 %v25, -0.5
    %v30 = vmul.f32 %v26, -0.5
    %v31 = vmul.f32 %v29, 1.442695
    %v32 = vpow.pop %v31
    %v33 = vmul.f32 %v30, 1.442695
    %v34 = vpow.pop %v33
    %v35 = vmul.f32 %v25, %v32
    %v36 = vmul.f32 %v26, %v34
    %v37 = vadd.f32 %v27, %v35
    %v38 = vadd.f32 %v28, %v36
    %39 = vst [vmem:[#allocation5] sm:$0xff] %v37
    %40 = vst [vmem:[#allocation5 + $0x8] sm:$0xff] %v38
    // Predicated region
    $region10: #{tpu_custom_call.1} parent=1 // pred_check
      _
    $region11: #{tpu_custom_call.1} parent=1 // pred_check_branch
      %42 = sbr.rel (0) target = $region13
    $region12: #{tpu_custom_call.1} parent=1 // pred_region
      %s44 = ssub.s32 256, 256
      %45 = vsyncadd [#allocation4], %s44
      %s47 = sshll.u32 [#allocation5], 4
      %s48 = int_to_ptr.vmem [resolvable:$true] %s47
      %50 = dma.vmem_to_hbm [thread:$0]  %s48, 256, %s1, [#allocation4]
    $region13: #{tpu_custom_call.1} parent=1 // pred_fallthru
      _
    // Predicated region
    $region14: #{tpu_custom_call.1} parent=1 // pred_check
      _
    $region15: #{tpu_custom_call.1} parent=1 // pred_check_branch
      %52 = sbr.rel (0) target = $region17
    $region16: #{tpu_custom_call.1} parent=1 // pred_region
      %53 = dma.done [#allocation4], 256
    $region17: #{tpu_custom_call.1} parent=1 // pred_fallthru
      _
    %54 = vsyncpa [#allocation3], 1
    %55 = vsyncpa [#allocation4], 1

</llo_original>
